<compile_context>
chip_gen: v5e
topology: v5e:2x2
jax: 0.10.0
libtpu: 0.0.40
codegen_flags: <defaults>
</compile_context>

<pallas_src>
from functools import partial

import jax
import jax.numpy as jnp
from jax import lax
from jax.experimental import pallas as pl
from jax.experimental.pallas import tpu as pltpu


def _round_up(x, m):
    return (x + m - 1) // m * m


def inter_kernel(idx_ref, start_ref, end_ref,                 # (Lp,1), (Bp,1), (Bp,1) int32
                 emb_ref, w1_ref, b1_ref, w2_ref, b2_ref,     # VMEM f32 (padded)
                 out_ref):                                    # (Bp, Hp) f32
    Lp = idx_ref.shape[0]
    Vp = emb_ref.shape[0]
    Bp, Hp = out_ref.shape

    # ---- EmbeddingBag(mode='sum', include_last_offset=True) as matmuls ----
    # seg[b, j] = 1  iff  offsets[b] <= j < offsets[b+1]          (Bp, Lp)
    # Padded bag rows have start == end == 0 -> all-zero rows (empty bags -> 0, as in PyTorch).
    # seg / onehot are exactly 0/1, so a bf16 cast is bit-exact and lets the mask
    # matmul use the native bf16 MXU path (accumulation stays f32).
    j_iota = lax.broadcasted_iota(jnp.int32, (Bp, Lp), 1)
    seg = ((j_iota >= start_ref[...]) & (j_iota < end_ref[...])).astype(jnp.bfloat16)

    # onehot[j, v] = 1 iff indices[j] == v                        (Lp, Vp)
    # Padded j's are harmless: seg masks every j >= offsets[-1].
    v_iota = lax.broadcasted_iota(jnp.int32, (Lp, Vp), 1)
    onehot = (v_iota == idx_ref[...]).astype(jnp.bfloat16)

    # counts[b, v] = #{ j in bag b : indices[j] == v }            (Bp, Vp)   MXU (bf16 in, f32 acc)
    counts = jnp.dot(seg, onehot, preferred_element_type=jnp.float32)
    # bags[b, :]  = sum_v counts[b, v] * emb[v, :]                (Bp, Hp)   MXU (f32)
    bags = jnp.dot(counts, emb_ref[...], preferred_element_type=jnp.float32)

    # ---- ReLU on the bag embeddings (stays in vregs, lane-dense) ----
    x = jnp.maximum(bags, 0.0)

    # ---- Linear(H, H) -> Dropout(identity) -> ReLU ----
    h1 = jnp.dot(x, w1_ref[...], preferred_element_type=jnp.float32) + b1_ref[...]
    h1 = jnp.maximum(h1, 0.0)

    # ---- Linear(H, H) -> Dropout(identity) -> ReLU ----
    h2 = jnp.dot(h1, w2_ref[...], preferred_element_type=jnp.float32) + b2_ref[...]
    h2 = jnp.maximum(h2, 0.0)

    out_ref[...] = h2


def init_padded_params(emb, w1_t, b1, w2_t, b2):
    """One-time (model-init) padding of call-invariant parameters to lane/sublane-dense
    shapes. emb: (V, H) f32; w*_t: (H, H) f32 (already transposed); b*: (H,) f32."""
    V, H = emb.shape
    Hp = _round_up(H, 128)
    Vp = _round_up(V, 128)
    f32 = jnp.float32

    # NOTE(VMEM budget): the whole embedding table is DMA'd into VMEM by the kernel.
    # At this size (Vp*Hp*4 = 64 KiB) that's trivial on v5e/v6e/v7x. For large
    # vocabularies (e.g. V=100k, H=256 -> ~100 MiB) this can never be VMEM-resident
    # on v7x (64 MiB physical, 32 MiB default scoped): instead add a V-tiled grid
    # axis marked "arbitrary" with an f32 VMEM accumulator (BlockSpec (TILE_V, Hp)
    # on emb, (Bp, TILE_V) on the counts/mask, TILE_V sized against the *scoped*
    # limit with double-buffering), or scalar-prefetch the indices and DMA only the
    # L touched rows (O(L*H) VMEM, independent of V).
    params = dict(
        emb_p=jnp.zeros((Vp, Hp), f32).at[:V, :H].set(emb),
        w1_p=jnp.zeros((Hp, Hp), f32).at[:H, :H].set(w1_t),
        w2_p=jnp.zeros((Hp, Hp), f32).at[:H, :H].set(w2_t),
        # zero-padded bias -> padded columns stay exactly 0
        b1_p=jnp.zeros((1, Hp), f32).at[0, :H].set(b1.reshape(-1)),
        b2_p=jnp.zeros((1, Hp), f32).at[0, :H].set(b2.reshape(-1)),
    )
    return params


@partial(jax.jit, static_argnames=("hidden_size",))
def inter_model_forward(indices, offsets, params, *, hidden_size):
    """indices: int32 (L,), offsets: int32 (B+1,) with offsets[-1] == L (sorted).
    params: dict from init_padded_params. Returns (B, hidden_size) f32."""
    B = offsets.shape[0] - 1
    L = indices.shape[0]
    Bp = _round_up(B, 8)
    Lp = _round_up(L, 128)
    Hp = params["emb_p"].shape[1]
    f32 = jnp.float32

    # Per-call data only: indices along the sublane axis so the one-hot comparison
    # is a pure lane-broadcast; starts/ends likewise as (Bp, 1) columns.
    idx_col = jnp.zeros((Lp, 1), jnp.int32).at[:L, 0].set(indices.astype(jnp.int32))
    starts = jnp.zeros((Bp, 1), jnp.int32).at[:B, 0].set(offsets[:B].astype(jnp.int32))
    ends = jnp.zeros((Bp, 1), jnp.int32).at[:B, 0].set(offsets[1:].astype(jnp.int32))

    vmem = pl.BlockSpec(memory_space=pltpu.MemorySpace.VMEM)

    # Single-invocation pallas_call: no grid, no per-step scaffolding; every operand
    # is a full-array VMEM block. Keep the lane-dense (Bp, Hp) output (one unmasked
    # f32 vreg store) and slice back to (B, H) here inside the jitted wrapper.
    out_p = pl.pallas_call(
        inter_kernel,
        out_shape=jax.ShapeDtypeStruct((Bp, Hp), f32),
        in_specs=[vmem] * 8,
        out_specs=vmem,
    )(idx_col, starts, ends,
      params["emb_p"], params["w1_p"], params["b1_p"],
      params["w2_p"], params["b2_p"])

    return out_p[:B, :hidden_size]


def reference_forward(indices, offsets, emb, w1_t, b1, w2_t, b2):
    """Pure-JAX reference of the PyTorch forward (eval mode)."""
    B = offsets.shape[0] - 1
    rows = emb[indices]  # (L, H)
    seg = jnp.searchsorted(offsets[1:], jnp.arange(indices.shape[0]), side="right")
    bags = jax.ops.segment_sum(rows, seg, num_segments=B)
    x = jnp.maximum(bags, 0.0)
    h1 = jnp.maximum(x @ w1_t + b1.reshape(1, -1), 0.0)
    h2 = jnp.maximum(h1 @ w2_t + b2.reshape(1, -1), 0.0)
    return h2


if __name__ == "__main__":
    # Module hyper-params (small, per instructions).
    input_size = 50     # vocab size of the EmbeddingBag
    hidden_size = 32
    num_bags = 4
    total_indices = 12

    key = jax.random.PRNGKey(0)
    k_emb, k_w1, k_b1, k_w2, k_b2, k_idx = jax.random.split(key, 6)

    # Deterministic parameter init (shapes follow nn.EmbeddingBag / nn.Linear).
    emb = jax.random.normal(k_emb, (input_size, hidden_size), jnp.float32)
    bound = 1.0 / (hidden_size ** 0.5)
    w1 = jax.random.uniform(k_w1, (hidden_size, hidden_size), jnp.float32, -bound, bound)
    b1 = jax.random.uniform(k_b1, (hidden_size,), jnp.float32, -bound, bound)
    w2 = jax.random.uniform(k_w2, (hidden_size, hidden_size), jnp.float32, -bound, bound)
    b2 = jax.random.uniform(k_b2, (hidden_size,), jnp.float32, -bound, bound)

    # inter_feature = (indices, offsets) for the EmbeddingBag
    # (include_last_offset=True -> offsets has B+1 entries, last == L).
    indices = jax.random.randint(k_idx, (total_indices,), 0, input_size, jnp.int32)
    offsets = jnp.array([0, 3, 6, 9, 12], dtype=jnp.int32)

    # EmbeddingBag contract checks (sorted offsets, last offset == len(indices)).
    assert int(offsets[-1]) == total_indices
    assert bool(jnp.all(offsets[1:] >= offsets[:-1]))

    # Pre-transpose linear weights (PyTorch Linear stores (out, in); y = x W^T + b).
    w1_t = w1.T
    w2_t = w2.T

    # One-time parameter padding (hoisted out of the per-call forward path).
    params = init_padded_params(emb, w1_t, b1, w2_t, b2)
    params = jax.tree_util.tree_map(jax.block_until_ready, params)

    out = inter_model_forward(indices, offsets, params, hidden_size=hidden_size)
    out = jax.block_until_ready(out)

    ref = reference_forward(indices, offsets, emb, w1_t, b1, w2_t, b2)
    assert out.shape == (num_bags, hidden_size)
    assert jnp.allclose(out, ref, atol=1e-5, rtol=1e-5), "mismatch vs reference"

    print("KERNEL_OK")
</pallas_src>

<mosaic_0001>
module attributes {stable_mosaic.version = 11 : i64} {
  func.func @inter_kernel(%arg0: memref<128x1xi32, #tpu.memory_space<vmem>>, %arg1: memref<8x1xi32, #tpu.memory_space<vmem>>, %arg2: memref<8x1xi32, #tpu.memory_space<vmem>>, %arg3: memref<128x128xf32, #tpu.memory_space<vmem>>, %arg4: memref<128x128xf32, #tpu.memory_space<vmem>>, %arg5: memref<1x128xf32, #tpu.memory_space<vmem>>, %arg6: memref<128x128xf32, #tpu.memory_space<vmem>>, %arg7: memref<1x128xf32, #tpu.memory_space<vmem>>, %arg8: memref<8x128xf32, #tpu.memory_space<vmem>>) attributes {dimension_semantics = [], scalar_prefetch = 0 : i64, scratch_operands = 0 : i64, tpu.core_type = #tpu.core_type<tc>} {
    %0 = tpu.iota {dimensions = array<i32: 1>} : vector<8x128xi32>
    %c0 = arith.constant 0 : index
    %c0_0 = arith.constant 0 : index
    %1 = vector.load %arg1[%c0, %c0_0] : memref<8x1xi32, #tpu.memory_space<vmem>>, vector<8x1xi32>
    %2 = vector.broadcast %1 : vector<8x1xi32> to vector<8x128xi32>
    %3 = arith.cmpi sge, %0, %2 : vector<8x128xi32>
    %c0_1 = arith.constant 0 : index
    %c0_2 = arith.constant 0 : index
    %4 = vector.load %arg2[%c0_1, %c0_2] : memref<8x1xi32, #tpu.memory_space<vmem>>, vector<8x1xi32>
    %5 = vector.broadcast %4 : vector<8x1xi32> to vector<8x128xi32>
    %6 = arith.cmpi slt, %0, %5 : vector<8x128xi32>
    %7 = arith.andi %3, %6 : vector<8x128xi1>
    %8 = arith.extui %7 : vector<8x128xi1> to vector<8x128xi32>
    %9 = arith.sitofp %8 : vector<8x128xi32> to vector<8x128xf32>
    %10 = arith.truncf %9 : vector<8x128xf32> to vector<8x128xbf16>
    %11 = tpu.iota {dimensions = array<i32: 1>} : vector<128x128xi32>
    %c0_3 = arith.constant 0 : index
    %c0_4 = arith.constant 0 : index
    %12 = vector.load %arg0[%c0_3, %c0_4] : memref<128x1xi32, #tpu.memory_space<vmem>>, vector<128x1xi32>
    %13 = vector.broadcast %12 : vector<128x1xi32> to vector<128x128xi32>
    %14 = arith.cmpi eq, %11, %13 : vector<128x128xi32>
    %15 = arith.extui %14 : vector<128x128xi1> to vector<128x128xi32>
    %16 = arith.sitofp %15 : vector<128x128xi32> to vector<128x128xf32>
    %17 = arith.truncf %16 : vector<128x128xf32> to vector<128x128xbf16>
    %cst = arith.constant dense<0.000000e+00> : vector<8x128xf32>
    %18 = tpu.matmul %10, %17, %cst {dimension_numbers = #tpu.dot_dimension_numbers<[1], [0], [0], [1], [0, 0, 1, 1], [], []>} : vector<8x128xbf16>, vector<128x128xbf16>, vector<8x128xf32> -> vector<8x128xf32>
    %c0_5 = arith.constant 0 : index
    %c0_6 = arith.constant 0 : index
    %19 = vector.load %arg3[%c0_5, %c0_6] : memref<128x128xf32, #tpu.memory_space<vmem>>, vector<128x128xf32>
    %cst_7 = arith.constant dense<0.000000e+00> : vector<8x128xf32>
    %20 = tpu.matmul %18, %19, %cst_7 {dimension_numbers = #tpu.dot_dimension_numbers<[1], [0], [0], [1], [0, 0, 1, 1], [], []>} : vector<8x128xf32>, vector<128x128xf32>, vector<8x128xf32> -> vector<8x128xf32>
    %cst_8 = arith.constant 0.000000e+00 : f32
    %21 = vector.broadcast %cst_8 : f32 to vector<8x128xf32>
    %22 = arith.maximumf %20, %21 : vector<8x128xf32>
    %c0_9 = arith.constant 0 : index
    %c0_10 = arith.constant 0 : index
    %23 = vector.load %arg4[%c0_9, %c0_10] : memref<128x128xf32, #tpu.memory_space<vmem>>, vector<128x128xf32>
    %cst_11 = arith.constant dense<0.000000e+00> : vector<8x128xf32>
    %24 = tpu.matmul %22, %23, %cst_11 {dimension_numbers = #tpu.dot_dimension_numbers<[1], [0], [0], [1], [0, 0, 1, 1], [], []>} : vector<8x128xf32>, vector<128x128xf32>, vector<8x128xf32> -> vector<8x128xf32>
    %c0_12 = arith.constant 0 : index
    %c0_13 = arith.constant 0 : index
    %25 = vector.load %arg5[%c0_12, %c0_13] : memref<1x128xf32, #tpu.memory_space<vmem>>, vector<1x128xf32>
    %26 = vector.broadcast %25 : vector<1x128xf32> to vector<8x128xf32>
    %27 = arith.addf %24, %26 : vector<8x128xf32>
    %cst_14 = arith.constant 0.000000e+00 : f32
    %28 = vector.broadcast %cst_14 : f32 to vector<8x128xf32>
    %29 = arith.maximumf %27, %28 : vector<8x128xf32>
    %c0_15 = arith.constant 0 : index
    %c0_16 = arith.constant 0 : index
    %30 = vector.load %arg6[%c0_15, %c0_16] : memref<128x128xf32, #tpu.memory_space<vmem>>, vector<128x128xf32>
    %cst_17 = arith.constant dense<0.000000e+00> : vector<8x128xf32>
    %31 = tpu.matmul %29, %30, %cst_17 {dimension_numbers = #tpu.dot_dimension_numbers<[1], [0], [0], [1], [0, 0, 1, 1], [], []>} : vector<8x128xf32>, vector<128x128xf32>, vector<8x128xf32> -> vector<8x128xf32>
    %c0_18 = arith.constant 0 : index
    %c0_19 = arith.constant 0 : index
    %32 = vector.load %arg7[%c0_18, %c0_19] : memref<1x128xf32, #tpu.memory_space<vmem>>, vector<1x128xf32>
    %33 = vector.broadcast %32 : vector<1x128xf32> to vector<8x128xf32>
    %34 = arith.addf %31, %33 : vector<8x128xf32>
    %cst_20 = arith.constant 0.000000e+00 : f32
    %35 = vector.broadcast %cst_20 : f32 to vector<8x128xf32>
    %36 = arith.maximumf %34, %35 : vector<8x128xf32>
    %c0_21 = arith.constant 0 : index
    %c0_22 = arith.constant 0 : index
    %37 = vector.load %arg8[%c0_21, %c0_22] : memref<8x128xf32, #tpu.memory_space<vmem>>, vector<8x128xf32>
    tpu.vector_store %arg8[%c0_21, %c0_22], %36 {strides = array<i32>} : memref<8x128xf32, #tpu.memory_space<vmem>>, vector<8x128xf32>,
    return
  }
}

</mosaic_0001>

<llo_original>
// kernel: inter_model_forward.1
$region0: #{inter_model_forward.1}
  #allocation0 [shape = 'u32[]', space=smem, size = 0x4, offset = 0x4, fixed_abs, tag = 'smem constant byte address 0x4 - core index']
  #allocation1 [shape = 'u32[72,128]{1,0:T(1,128)}', space=vmem, size = 0x9000, scoped, tag = 'internal scratch']
  %s0 = inlined_call_operand.vmem [shape: s32[128,1], index: 0, kind: input, shape index: {}]
  %s1 = inlined_call_operand.vmem [shape: s32[8,1], index: 1, kind: input, shape index: {}]
  %s2 = inlined_call_operand.vmem [shape: s32[8,1], index: 2, kind: input, shape index: {}]
  %s3 = inlined_call_operand.vmem [shape: f32[128,128], index: 3, kind: input, shape index: {}]
  %s4 = inlined_call_operand.hbm [shape: f32[128,128], index: 4, kind: input, shape index: {}]
  %s5 = inlined_call_operand.vmem [shape: f32[1,128], index: 5, kind: input, shape index: {}]
  %s6 = inlined_call_operand.hbm [shape: f32[128,128], index: 6, kind: input, shape index: {}]
  %s7 = inlined_call_operand.vmem [shape: f32[1,128], index: 7, kind: input, shape index: {}]
  %s8 = inlined_call_operand.vmem [shape: f32[8,128], index: 8, kind: output, shape index: {}]
  %s9 = sld [smem:[#allocation0]]
  $region50: #{inter_model_forward.1} parent=0
    _
  %s11 = ssub.s32 1, %s9
  %s12 = scalar_select 0, %s11, %s9
  $region1: #{inter_model_forward.1} parent=0
    #allocation2 [shape = 'u8[65536]{0}', space=vmem, size = 0x10000, scoped, tag = 'input window, operand 4, single buffered']
    #allocation3 [shape = 's32[1]{0}', space=sflag, size = 0x4, scoped, tag = 'scoped memory for inter_model_forward.1']
    #allocation4 [shape = 'u8[65536]{0}', space=vmem, size = 0x10000, scoped, tag = 'input window, operand 6, single buffered']
    #allocation5 [shape = 's32[1]{0}', space=sflag, size = 0x4, scoped, tag = 'scoped memory for inter_model_forward.1']
    %13 = vsyncpa [#allocation3], 0
    %14 = vsyncpa [#allocation5], 0
    // Predicated region
    $region2: #{inter_model_forward.1} parent=1 // pred_check
      _
    $region3: #{inter_model_forward.1} parent=1 // pred_check_branch
      %16 = sbr.rel (0) target = $region5
    $region4: #{inter_model_forward.1} parent=1 // pred_region
      _
    $region5: #{inter_model_forward.1} parent=1 // pred_fallthru
      _
    // Predicated region
    $region6: #{inter_model_forward.1} parent=1 // pred_check
      _
    $region7: #{inter_model_forward.1} parent=1 // pred_check_branch
      %18 = sbr.rel (0) target = $region9
    $region8: #{inter_model_forward.1} parent=1 // pred_region
      _
    $region9: #{inter_model_forward.1} parent=1 // pred_fallthru
      _
    // Predicated region
    $region10: #{inter_model_forward.1} parent=1 // pred_check
      _
    $region11: #{inter_model_forward.1} parent=1 // pred_check_branch
      %20 = sbr.rel (0) target = $region13
    $region12: #{inter_model_forward.1} parent=1 // pred_region
      _
    $region13: #{inter_model_forward.1} parent=1 // pred_fallthru
      _
    // Predicated region
    $region14: #{inter_model_forward.1} parent=1 // pred_check
      _
    $region15: #{inter_model_forward.1} parent=1 // pred_check_branch
      %22 = sbr.rel (0) target = $region17
    $region16: #{inter_model_forward.1} parent=1 // pred_region
      _
    $region17: #{inter_model_forward.1} parent=1 // pred_fallthru
      _
    // Predicated region
    $region18: #{inter_model_forward.1} parent=1 // pred_check
      _
    $region19: #{inter_model_forward.1} parent=1 // pred_check_branch
      %24 = sbr.rel (0) target = $region21
    $region20: #{inter_model_forward.1} parent=1 // pred_region
      %26 = vsyncadd [#allocation3], 0
      %s27 = sshll.u32 %s4, 4
      %s28 = int_to_ptr.hbm [resolvable:$true] %s27
      %s29 = sshll.u32 [#allocation2], 4
      %s30 = int_to_ptr.vmem [resolvable:$true] %s29
      %35 = dma.hbm_to_vmem [thread:$0]  %s28, 2048, %s30, [#allocation3], 128, 128, 8
    $region21: #{inter_model_forward.1} parent=1 // pred_fallthru
      _
    // Predicated region
    $region22: #{inter_model_forward.1} parent=1 // pred_check
      _
    $region23: #{inter_model_forward.1} parent=1 // pred_check_branch
      %37 = sbr.rel (0) target = $region25
    $region24: #{inter_model_forward.1} parent=1 // pred_region
      _
    $region25: #{inter_model_forward.1} parent=1 // pred_fallthru
      _
    // Predicated region
    $region26: #{inter_model_forward.1} parent=1 // pred_check
      _
    $region27: #{inter_model_forward.1} parent=1 // pred_check_branch
      %39 = sbr.rel (0) target = $region29
    $region28: #{inter_model_forward.1} parent=1 // pred_region
      %41 = vsyncadd [#allocation5], 0
      %s42 = sshll.u32 %s6, 4
      %s43 = int_to_ptr.hbm [resolvable:$true] %s42
      %s44 = sshll.u32 [#allocation4], 4
      %s45 = int_to_ptr.vmem [resolvable:$true] %s44
      %50 = dma.hbm_to_vmem [thread:$0]  %s43, 2048, %s45, [#allocation5], 128, 128, 8
    $region29: #{inter_model_forward.1} parent=1 // pred_fallthru
      _
    // Predicated region
    $region30: #{inter_model_forward.1} parent=1 // pred_check
      _
    $region31: #{inter_model_forward.1} parent=1 // pred_check_branch
      %52 = sbr.rel (0) target = $region33
    $region32: #{inter_model_forward.1} parent=1 // pred_region
      _
    $region33: #{inter_model_forward.1} parent=1 // pred_fallthru
      _
    // Predicated region
    $region34: #{inter_model_forward.1} parent=1 // pred_check
      _
    $region35: #{inter_model_forward.1} parent=1 // pred_check_branch
      %54 = sbr.rel (0) target = $region37
    $region36: #{inter_model_forward.1} parent=1 // pred_region
      %56 = dma.done [#allocation3], 2048
    $region37: #{inter_model_forward.1} parent=1 // pred_fallthru
      _
    // Predicated region
    $region38: #{inter_model_forward.1} parent=1 // pred_check
      _
    $region39: #{inter_model_forward.1} parent=1 // pred_check_branch
      %58 = sbr.rel (0) target = $region41
    $region40: #{inter_model_forward.1} parent=1 // pred_region
      %60 = dma.done [#allocation5], 2048
    $region41: #{inter_model_forward.1} parent=1 // pred_fallthru
      _
    %v61 = vlaneseq
    %v62 = vand.u32 %v61, 127
    %v63 = vld [vmem:[%s1] sm:$0xff]
    %64 = vset.pattern.permute.xlu0 0
    %65 = vperm.xlu0 %64, %v63
    %v66 = vpop.permute.xlu0 %65
    %vm67 = vcmp.ge.s32.totalorder %v62, %v66
    %v68 = vld [vmem:[%s2] sm:$0xff]
    %69 = vset.pattern.permute.xlu0 0
    %70 = vperm.xlu0 %69, %v68
    %v71 = vpop.permute.xlu0 %70
    %vm72 = vcmp.lt.s32.totalorder %v62, %v71
    %vm73 = vmand %vm67, %vm72
    %v74 = vsel %vm73, 1, 0
    %v75 = vcvt.s32.f32 %v74
    %v76 = vpack.c.bf16 %v75, %v75
    %v77 = vld [vmem:[%s0] sm:$0xff]
    %v78 = vld [vmem:[%s0 + $0x8] sm:$0xff]
    %v79 = vld [vmem:[%s0 + $0x10] sm:$0xff]
    %v80 = vld [vmem:[%s0 + $0x18] sm:$0xff]
    %v81 = vld [vmem:[%s0 + $0x20] sm:$0xff]
    %v82 = vld [vmem:[%s0 + $0x28] sm:$0xff]
    %v83 = vld [vmem:[%s0 + $0x30] sm:$0xff]
    %v84 = vld [vmem:[%s0 + $0x38] sm:$0xff]
    %v85 = vld [vmem:[%s0 + $0x40] sm:$0xff]
    %v86 = vld [vmem:[%s0 + $0x48] sm:$0xff]
    %v87 = vld [vmem:[%s0 + $0x50] sm:$0xff]
    %v88 = vld [vmem:[%s0 + $0x58] sm:$0xff]
    %v89 = vld [vmem:[%s0 + $0x60] sm:$0xff]
    %v90 = vld [vmem:[%s0 + $0x68] sm:$0xff]
    %v91 = vld [vmem:[%s0 + $0x70] sm:$0xff]
    %v92 = vld [vmem:[%s0 + $0x78] sm:$0xff]
    %93 = vset.pattern.permute.xlu0 0
    %94 = vperm.xlu0 %93, %v77
    %v95 = vpop.permute.xlu0 %94
    %96 = vset.pattern.permute.xlu0 0
    %97 = vperm.xlu0 %96, %v78
    %v98 = vpop.permute.xlu0 %97
    %99 = vset.pattern.permute.xlu0 0
    %100 = vperm.xlu0 %99, %v79
    %v101 = vpop.permute.xlu0 %100
    %102 = vset.pattern.permute.xlu0 0
    %103 = vperm.xlu0 %102, %v80
    %v104 = vpop.permute.xlu0 %103
    %105 = vset.pattern.permute.xlu0 0
    %106 = vperm.xlu0 %105, %v81
    %v107 = vpop.permute.xlu0 %106
    %108 = vset.pattern.permute.xlu0 0
    %109 = vperm.xlu0 %108, %v82
    %v110 = vpop.permute.xlu0 %109
    %111 = vset.pattern.permute.xlu0 0
    %112 = vperm.xlu0 %111, %v83
    %v113 = vpop.permute.xlu0 %112
    %114 = vset.pattern.permute.xlu0 0
    %115 = vperm.xlu0 %114, %v84
    %v116 = vpop.permute.xlu0 %115
    %117 = vset.pattern.permute.xlu0 0
    %118 = vperm.xlu0 %117, %v85
    %v119 = vpop.permute.xlu0 %118
    %120 = vset.pattern.permute.xlu0 0
    %121 = vperm.xlu0 %120, %v86
    %v122 = vpop.permute.xlu0 %121
    %123 = vset.pattern.permute.xlu0 0
    %124 = vperm.xlu0 %123, %v87
    %v125 = vpop.permute.xlu0 %124
    %126 = vset.pattern.permute.xlu0 0
    %127 = vperm.xlu0 %126, %v88
    %v128 = vpop.permute.xlu0 %127
    %129 = vset.pattern.permute.xlu0 0
    %130 = vperm.xlu0 %129, %v89
    %v131 = vpop.permute.xlu0 %130
    %132 = vset.pattern.permute.xlu0 0
    %133 = vperm.xlu0 %132, %v90
    %v134 = vpop.permute.xlu0 %133
    %135 = vset.pattern.permute.xlu0 0
    %136 = vperm.xlu0 %135, %v91
    %v137 = vpop.permute.xlu0 %136
    %138 = vset.pattern.permute.xlu0 0
    %139 = vperm.xlu0 %138, %v92
    %v140 = vpop.permute.xlu0 %139
    %vm141 = vcmp.eq.s32.totalorder %v62, %v95
    %vm142 = vcmp.eq.s32.totalorder %v62, %v98
    %vm143 = vcmp.eq.s32.totalorder %v62, %v101
    %vm144 = vcmp.eq.s32.totalorder %v62, %v104
    %vm145 = vcmp.eq.s32.totalorder %v62, %v107
    %vm146 = vcmp.eq.s32.totalorder %v62, %v110
    %vm147 = vcmp.eq.s32.totalorder %v62, %v113
    %vm148 = vcmp.eq.s32.totalorder %v62, %v116
    %vm149 = vcmp.eq.s32.totalorder %v62, %v119
    %vm150 = vcmp.eq.s32.totalorder %v62, %v122
    %vm151 = vcmp.eq.s32.totalorder %v62, %v125
    %vm152 = vcmp.eq.s32.totalorder %v62, %v128
    %vm153 = vcmp.eq.s32.totalorder %v62, %v131
    %vm154 = vcmp.eq.s32.totalorder %v62, %v134
    %vm155 = vcmp.eq.s32.totalorder %v62, %v137
    %vm156 = vcmp.eq.s32.totalorder %v62, %v140
    %v157 = vsel %vm141, 1, 0
    %v158 = vsel %vm142, 1, 0
    %v159 = vsel %vm143, 1, 0
    %v160 = vsel %vm144, 1, 0
    %v161 = vsel %vm145, 1, 0
    %v162 = vsel %vm146, 1, 0
    %v163 = vsel %vm147, 1, 0
    %v164 = vsel %vm148, 1, 0
    %v165 = vsel %vm149, 1, 0
    %v166 = vsel %vm150, 1, 0
    %v167 = vsel %vm151, 1, 0
    %v168 = vsel %vm152, 1, 0
    %v169 = vsel %vm153, 1, 0
    %v170 = vsel %vm154, 1, 0
    %v171 = vsel %vm155, 1, 0
    %v172 = vsel %vm156, 1, 0
    %v173 = vcvt.s32.f32 %v157
    %v174 = vcvt.s32.f32 %v158
    %v175 = vcvt.s32.f32 %v159
    %v176 = vcvt.s32.f32 %v160
    %v177 = vcvt.s32.f32 %v161
    %v178 = vcvt.s32.f32 %v162
    %v179 = vcvt.s32.f32 %v163
    %v180 = vcvt.s32.f32 %v164
    %v181 = vcvt.s32.f32 %v165
    %v182 = vcvt.s32.f32 %v166
    %v183 = vcvt.s32.f32 %v167
    %v184 = vcvt.s32.f32 %v168
    %v185 = vcvt.s32.f32 %v169
    %v186 = vcvt.s32.f32 %v170
    %v187 = vcvt.s32.f32 %v171
    %v188 = vcvt.s32.f32 %v172
    %v189 = vpack.c.bf16 %v174, %v173
    %v190 = vpack.c.bf16 %v176, %v175
    %v191 = vpack.c.bf16 %v178, %v177
    %v192 = vpack.c.bf16 %v180, %v179
    %v193 = vpack.c.bf16 %v182, %v181
    %v194 = vpack.c.bf16 %v184, %v183
    %v195 = vpack.c.bf16 %v186, %v185
    %v196 = vpack.c.bf16 %v188, %v187
    %197 = vmatpush.bf16.msra.mxu0 %v196
    %198 = vmatpush.bf16.msra.mxu0 %v195
    %199 = vmatpush.bf16.msra.mxu0 %v194
    %200 = vmatpush.bf16.msra.mxu0 %v193
    %201 = vmatpush.bf16.msra.mxu0 %v192
    %202 = vmatpush.bf16.msra.mxu0 %v191
    %203 = vmatpush.bf16.msra.mxu0 %v190
    %204 = vmatpush.bf16.msra.mxu0 %v189
    %205 = vmatmul.bf16.gmra.mxu0 %v76
    %v206 = vpop.f32.mrf.mxu0
    %v207 = vadd.f32 0.0, %v206
    %v208 = vpop.f32.mrf.mxu0
    %209 = vdwg.mxu0
    %v210 = vld [vmem:[%s3] sm:$0xff]
    %v211 = vld [vmem:[%s3 + $0x8] sm:$0xff]
    %v212 = vld [vmem:[%s3 + $0x10] sm:$0xff]
    %v213 = vld [vmem:[%s3 + $0x18] sm:$0xff]
    %v214 = vld [vmem:[%s3 + $0x20] sm:$0xff]
    %v215 = vld [vmem:[%s3 + $0x28] sm:$0xff]
    %v216 = vld [vmem:[%s3 + $0x30] sm:$0xff]
    %v217 = vld [vmem:[%s3 + $0x38] sm:$0xff]
    %v218 = vld [vmem:[%s3 + $0x40] sm:$0xff]
    %v219 = vld [vmem:[%s3 + $0x48] sm:$0xff]
    %v220 = vld [vmem:[%s3 + $0x50] sm:$0xff]
    %v221 = vld [vmem:[%s3 + $0x58] sm:$0xff]
    %v222 = vld [vmem:[%s3 + $0x60] sm:$0xff]
    %v223 = vld [vmem:[%s3 + $0x68] sm:$0xff]
    %v224 = vld [vmem:[%s3 + $0x70] sm:$0xff]
    %v225 = vld [vmem:[%s3 + $0x78] sm:$0xff]
    %226 = vmatpush.msra.mxu0 %v225
    %227 = vmatpush.msra.mxu0 %v224
    %228 = vmatpush.msra.mxu0 %v223
    %229 = vmatpush.msra.mxu0 %v222
    %230 = vmatpush.msra.mxu0 %v221
    %231 = vmatpush.msra.mxu0 %v220
    %232 = vmatpush.msra.mxu0 %v219
    %233 = vmatpush.msra.mxu0 %v218
    %234 = vmatpush.msra.mxu0 %v217
    %235 = vmatpush.msra.mxu0 %v216
    %236 = vmatpush.msra.mxu0 %v215
    %237 = vmatpush.msra.mxu0 %v214
    %238 = vmatpush.msra.mxu0 %v213
    %239 = vmatpush.msra.mxu0 %v212
    %240 = vmatpush.msra.mxu0 %v211
    %241 = vmatpush.msra.mxu0 %v210
    %242 = vmatmul.f32.gmra.mxu0 %v207
    %v243 = vpop.f32.mrf.mxu0
    %v244 = vadd.f32 0.0, %v243
    %245 = vdwg.mxu0
    %v246 = vmax.f32 %v244, 0.0
    %v247 = vld [vmem:[#allocation2] sm:$0xff]
    %v248 = vld [vmem:[#allocation2 + $0x8] sm:$0xff]
    %v249 = vld [vmem:[#allocation2 + $0x10] sm:$0xff]
    %v250 = vld [vmem:[#allocation2 + $0x18] sm:$0xff]
    %v251 = vld [vmem:[#allocation2 + $0x20] sm:$0xff]
    %v252 = vld [vmem:[#allocation2 + $0x28] sm:$0xff]
    %v253 = vld [vmem:[#allocation2 + $0x30] sm:$0xff]
    %v254 = vld [vmem:[#allocation2 + $0x38] sm:$0xff]
    %v255 = vld [vmem:[#allocation2 + $0x40] sm:$0xff]
    %v256 = vld [vmem:[#allocation2 + $0x48] sm:$0xff]
    %v257 = vld [vmem:[#allocation2 + $0x50] sm:$0xff]
    %v258 = vld [vmem:[#allocation2 + $0x58] sm:$0xff]
    %v259 = vld [vmem:[#allocation2 + $0x60] sm:$0xff]
    %v260 = vld [vmem:[#allocation2 + $0x68] sm:$0xff]
    %v261 = vld [vmem:[#allocation2 + $0x70] sm:$0xff]
    %v262 = vld [vmem:[#allocation2 + $0x78] sm:$0xff]
    %v263 = vld [vmem:[%s5] sm:$0x1]
    %v265 = vperm.slane %v263, 0
    %267 = vmatpush.msra.mxu0 %v262
    %268 = vmatpush.msra.mxu0 %v261
    %269 = vmatpush.msra.mxu0 %v260
    %270 = vmatpush.msra.mxu0 %v259
    %271 = vmatpush.msra.mxu0 %v258
    %272 = vmatpush.msra.mxu0 %v257
    %273 = vmatpush.msra.mxu0 %v256
    %274 = vmatpush.msra.mxu0 %v255
    %275 = vmatpush.msra.mxu0 %v254
    %276 = vmatpush.msra.mxu0 %v253
    %277 = vmatpush.msra.mxu0 %v252
    %278 = vmatpush.msra.mxu0 %v251
    %279 = vmatpush.msra.mxu0 %v250
    %280 = vmatpush.msra.mxu0 %v249
    %281 = vmatpush.msra.mxu0 %v248
    %282 = vmatpush.msra.mxu0 %v247
    %283 = vmatmul.f32.gmra.mxu0 %v246
    %v284 = vpop.f32.mrf.mxu0
    %v285 = vadd.f32 %v265, %v284
    %286 = vdwg.mxu0
    %v287 = vmax.f32 %v285, 0.0
    %v288 = vld [vmem:[#allocation4] sm:$0xff]
    %v289 = vld [vmem:[#allocation4 + $0x8] sm:$0xff]
    %v290 = vld [vmem:[#allocation4 + $0x10] sm:$0xff]
    %v291 = vld [vmem:[#allocation4 + $0x18] sm:$0xff]
    %v292 = vld [vmem:[#allocation4 + $0x20] sm:$0xff]
    %v293 = vld [vmem:[#allocation4 + $0x28] sm:$0xff]
    %v294 = vld [vmem:[#allocation4 + $0x30] sm:$0xff]
    %v295 = vld [vmem:[#allocation4 + $0x38] sm:$0xff]
    %v296 = vld [vmem:[#allocation4 + $0x40] sm:$0xff]
    %v297 = vld [vmem:[#allocation4 + $0x48] sm:$0xff]
    %v298 = vld [vmem:[#allocation4 + $0x50] sm:$0xff]
    %v299 = vld [vmem:[#allocation4 + $0x58] sm:$0xff]
    %v300 = vld [vmem:[#allocation4 + $0x60] sm:$0xff]
    %v301 = vld [vmem:[#allocation4 + $0x68] sm:$0xff]
    %v302 = vld [vmem:[#allocation4 + $0x70] sm:$0xff]
    %v303 = vld [vmem:[#allocation4 + $0x78] sm:$0xff]
    %v304 = vld [vmem:[%s7] sm:$0x1]
    %v306 = vperm.slane %v304, 0
    %308 = vmatpush.msra.mxu0 %v303
    %309 = vmatpush.msra.mxu0 %v302
    %310 = vmatpush.msra.mxu0 %v301
    %311 = vmatpush.msra.mxu0 %v300
    %312 = vmatpush.msra.mxu0 %v299
    %313 = vmatpush.msra.mxu0 %v298
    %314 = vmatpush.msra.mxu0 %v297
    %315 = vmatpush.msra.mxu0 %v296
    %316 = vmatpush.msra.mxu0 %v295
    %317 = vmatpush.msra.mxu0 %v294
    %318 = vmatpush.msra.mxu0 %v293
    %319 = vmatpush.msra.mxu0 %v292
    %320 = vmatpush.msra.mxu0 %v291
    %321 = vmatpush.msra.mxu0 %v290
    %322 = vmatpush.msra.mxu0 %v289
    %323 = vmatpush.msra.mxu0 %v288
    %324 = vmatmul.f32.gmra.mxu0 %v287
    %v325 = vpop.f32.mrf.mxu0
    %v326 = vadd.f32 %v306, %v325
    %327 = vdwg.mxu0
    %v328 = vmax.f32 %v326, 0.0
    %329 = vst [vmem:[%s8] sm:$0xff] %v328
    // Predicated region
    $region42: #{inter_model_forward.1} parent=1 // pred_check
      _
    $region43: #{inter_model_forward.1} parent=1 // pred_check_branch
      %331 = sbr.rel (0) target = $region45
    $region44: #{inter_model_forward.1} parent=1 // pred_region
      _
    $region45: #{inter_model_forward.1} parent=1 // pred_fallthru
      _
    // Predicated region
    $region46: #{inter_model_forward.1} parent=1 // pred_check
      _
    $region47: #{inter_model_forward.1} parent=1 // pred_check_branch
      %333 = sbr.rel (0) target = $region49
    $region48: #{inter_model_forward.1} parent=1 // pred_region
      _
    $region49: #{inter_model_forward.1} parent=1 // pred_fallthru
      _
    %334 = vsyncpa [#allocation3], 1
    %335 = vsyncpa [#allocation5], 1

</llo_original>
